<compile_context>
chip_gen: v7x
topology: tpu7x:2x2x1
jax: 0.10.0
libtpu: 0.0.40
codegen_flags: <defaults>
</compile_context>

<pallas_src>
import jax
import jax.numpy as jnp
from jax import lax
from jax.experimental import pallas as pl
from jax.experimental.pallas import tpu as pltpu

_LANES = 128
_TARGET_BLOCK_BYTES = 4 * 1024 * 1024   # ~4 MiB per block, dtype-independent
_MIN_MEGACORE_TILES = 4                 # give v7x's 2 TCs something to split
_VMEM_LIMIT_BYTES = 40 * 1024 * 1024    # 16 MiB of pipeline buffers + headroom,
                                        # still under v7x's 64 MiB physical VMEM


def _knots_kernel(params_ref, x_ref, o_ref):
    # params_ref: SMEM f32[4] -> [alpha, beta, gamma, delta]; delta unused.
    alpha = params_ref[0]
    beta = params_ref[1]
    gamma = params_ref[2]
    x = x_ref[...]
    # Horner form: alpha + x*(beta + gamma*x)
    o_ref[...] = (alpha + x * (beta + gamma * x)).astype(o_ref.dtype)


def _round_up(x: int, m: int) -> int:
    return ((x + m - 1) // m) * m


def _pick_tile_rows(rows: int, itemsize: int) -> int:
    # Sublane packing: 8 rows for 32-bit, 16 for 16-bit, 32 for 8-bit dtypes.
    sub = max(8, 32 // itemsize)
    if rows <= sub:
        # Single block equal to the full array dims (always a legal block).
        return rows
    # ~4 MiB per block, rounded down to a sublane multiple.
    budget_rows = max(sub, (_TARGET_BLOCK_BYTES // (_LANES * itemsize)) // sub * sub)
    # Ensure at least _MIN_MEGACORE_TILES grid steps when the input allows it.
    split_rows = _round_up(-(-rows // _MIN_MEGACORE_TILES), sub)
    return max(sub, min(budget_rows, split_rows))


def _run_kernel_2d(x2d, params_f32, out_dtype, donate_x=False):
    rows = x2d.shape[0]
    itemsize = jnp.dtype(x2d.dtype).itemsize
    tile_rows = _pick_tile_rows(rows, itemsize)
    grid = (pl.cdiv(rows, tile_rows),)

    n_elems = rows * _LANES
    cost = pl.CostEstimate(
        flops=4 * n_elems,            # 2 mul + 2 add per element
        transcendentals=0,
        bytes_accessed=2 * n_elems * itemsize,
    )

    extra = {}
    if donate_x and jnp.dtype(out_dtype) == x2d.dtype:
        # Caller guarantees x can be donated: reuse its buffer for the output.
        extra["input_output_aliases"] = {1: 0}

    return pl.pallas_call(
        _knots_kernel,
        out_shape=jax.ShapeDtypeStruct((rows, _LANES), out_dtype),
        grid=grid,
        in_specs=[
            pl.BlockSpec(memory_space=pltpu.SMEM),                 # scalar params
            pl.BlockSpec((tile_rows, _LANES), lambda i: (i, 0)),   # X tile
        ],
        out_specs=pl.BlockSpec((tile_rows, _LANES), lambda i: (i, 0)),
        compiler_params=pltpu.CompilerParams(
            dimension_semantics=("parallel",),
            vmem_limit_bytes=_VMEM_LIMIT_BYTES,
        ),
        cost_estimate=cost,
        **extra,
    )(params_f32, x2d)


def knots_forward(x, params, *, donate_x=False):
    """Elementwise polynomial: alpha + beta*x + gamma*x**2.

    x:      any-shape array (NCHW in the reference).
    params: [alpha, beta, gamma, delta] (delta unused, matching PyTorch).
    Output dtype follows x (note: PyTorch with fp32 Parameters would promote
    sub-fp32 inputs to fp32; minor semantic difference, not a numerical bug).
    """
    orig_shape = x.shape
    dtype = x.dtype
    params_f32 = params.astype(jnp.float32)

    n = x.size
    if n == 0:
        return jnp.zeros(orig_shape, dtype=dtype)

    flat = x.reshape(-1)              # contiguous reshape: free
    rem = n % _LANES

    if rem == 0:
        # Zero-copy path: lane-dense [rows, 128] view straight into the kernel.
        x2d = flat.reshape(n // _LANES, _LANES)
        out2d = _run_kernel_2d(x2d, params_f32, dtype, donate_x=donate_x)
        return out2d.reshape(orig_shape)

    # Ragged tail (< 128 elements): pad up to one full lane row, run a single
    # kernel over everything, then trim the padded lanes off the output.
    # TODO(synk): fold the tail into the kernel via a masked final block so the
    # pad/trim passes disappear entirely.
    rows = pl.cdiv(n, _LANES)
    pad = rows * _LANES - n
    flat_p = jnp.concatenate([flat, jnp.zeros((pad,), dtype=dtype)])
    x2d = flat_p.reshape(rows, _LANES)
    out2d = _run_kernel_2d(x2d, params_f32, dtype, donate_x=False)
    out_flat = lax.slice(out2d.reshape(-1), (0,), (n,))
    return out_flat.reshape(orig_shape)


if __name__ == "__main__":
    key = jax.random.PRNGKey(0)
    kx, kp, kx2 = jax.random.split(key, 3)

    # Small NCHW input consistent with an elementwise module.
    x = jax.random.normal(kx, (2, 4, 16, 16), dtype=jnp.float32)

    # Deterministic parameter values. (PyTorch __init__ sets all four scalars
    # to 0.0; we draw deterministic nonzero values so the output is nontrivial
    # while keeping the exact forward-pass semantics.)
    params = jax.random.normal(kp, (4,), dtype=jnp.float32)  # [alpha,beta,gamma,delta]

    out = knots_forward(x, params)
    jax.block_until_ready(out)
    ref = params[0] + params[1] * x + params[2] * x ** 2
    assert out.shape == x.shape
    assert jnp.allclose(out, ref, atol=1e-5, rtol=1e-5)

    # Also exercise the ragged path (element count not a multiple of 128).
    x2 = jax.random.normal(kx2, (3, 5, 7), dtype=jnp.float32)
    out2 = knots_forward(x2, params)
    jax.block_until_ready(out2)
    ref2 = params[0] + params[1] * x2 + params[2] * x2 ** 2
    assert out2.shape == x2.shape
    assert jnp.allclose(out2, ref2, atol=1e-5, rtol=1e-5)

    print("KERNEL_OK")
</pallas_src>

<mosaic_0001>
module attributes {stable_mosaic.version = 11 : i64} {
  func.func @_knots_kernel(%arg0: i32, %arg1: memref<4xf32, #tpu.memory_space<smem>>, %arg2: memref<8x128xf32, #tpu.memory_space<vmem>>, %arg3: memref<8x128xf32, #tpu.memory_space<vmem>>) attributes {dimension_semantics = [#tpu.dimension_semantics<parallel>], iteration_bounds = array<i64: 2>, scalar_prefetch = 0 : i64, scratch_operands = 0 : i64, tpu.core_type = #tpu.core_type<tc>, window_params = [{transform_indices = @transform_0, window_bounds = array<i64: 4>}, {transform_indices = @transform_1, window_bounds = array<i64: 8, 128>}, {transform_indices = @transform_2, window_bounds = array<i64: 8, 128>}]} {
    %c0 = arith.constant 0 : index
    %0 = memref.load %arg1[%c0] : memref<4xf32, #tpu.memory_space<smem>>
    %c1 = arith.constant 1 : index
    %1 = memref.load %arg1[%c1] : memref<4xf32, #tpu.memory_space<smem>>
    %c2 = arith.constant 2 : index
    %2 = memref.load %arg1[%c2] : memref<4xf32, #tpu.memory_space<smem>>
    %c0_0 = arith.constant 0 : index
    %c0_1 = arith.constant 0 : index
    %3 = vector.load %arg2[%c0_0, %c0_1] : memref<8x128xf32, #tpu.memory_space<vmem>>, vector<8x128xf32>
    %4 = vector.broadcast %2 : f32 to vector<8x128xf32>
    %5 = arith.mulf %4, %3 : vector<8x128xf32>
    %6 = vector.broadcast %1 : f32 to vector<8x128xf32>
    %7 = arith.addf %6, %5 : vector<8x128xf32>
    %8 = arith.mulf %3, %7 : vector<8x128xf32>
    %9 = vector.broadcast %0 : f32 to vector<8x128xf32>
    %10 = arith.addf %9, %8 : vector<8x128xf32>
    %c0_2 = arith.constant 0 : index
    %c0_3 = arith.constant 0 : index
    %11 = vector.load %arg3[%c0_2, %c0_3] : memref<8x128xf32, #tpu.memory_space<vmem>>, vector<8x128xf32>
    tpu.vector_store %arg3[%c0_2, %c0_3], %10 {strides = array<i32>} : memref<8x128xf32, #tpu.memory_space<vmem>>, vector<8x128xf32>,
    return
  }
  func.func @transform_0(%arg0: i32) -> i32 {
    %c0_i32 = arith.constant 0 : i32
    %c0_i32_0 = arith.constant 0 : i32
    return %c0_i32 : i32
  }
  func.func @transform_1(%arg0: i32) -> (i32, i32) {
    %c0_i32 = arith.constant 0 : i32
    %c0_i32_0 = arith.constant 0 : i32
    return %arg0, %c0_i32 : i32, i32
  }
  func.func @transform_2(%arg0: i32) -> (i32, i32) {
    %c0_i32 = arith.constant 0 : i32
    %c0_i32_0 = arith.constant 0 : i32
    return %arg0, %c0_i32 : i32, i32
  }
}

</mosaic_0001>

<llo_original>
// kernel: tpu_custom_call.1
$region0: #{tpu_custom_call.1}
  #allocation0 [shape = 'u32[]', space=smem, size = 0x4, offset = 0x4, fixed_abs, tag = 'smem constant byte address 0x4 - core index']
  #allocation1 [shape = 'u32[144,128]{1,0:T(1,128)}', space=vmem, size = 0x12000, scoped, tag = 'internal scratch']
  %s0 = inlined_call_operand.hbm [shape: f32[4], index: 0, kind: input, shape index: {}]
  %s1 = inlined_call_operand.hbm [shape: f32[16,128], index: 1, kind: input, shape index: {}]
  %s2 = inlined_call_operand.hbm [shape: f32[16,128], index: 2, kind: output, shape index: {}]
  %s3 = sld [smem:[#allocation0]]
  $region49: #{tpu_custom_call.1} parent=0
    _
  %s5 = ssub.s32 1, %s3
  %s6 = scalar_select 0, %s5, %s3
  $region1: #{tpu_custom_call.1} parent=0
    #allocation2 [shape = 'u8[512]{0}', space=smem, size = 0x200, scoped, tag = 'input window, operand 0, single buffered']
    #allocation3 [shape = 's32[2]{0}', space=sflag, size = 0x8, scoped, tag = 'scoped memory for tpu_custom_call.1']
    #allocation4 [shape = 's32[2]{0}', space=sflag, size = 0x8, scoped, tag = 'scoped memory for tpu_custom_call.1']
    #allocation5 [shape = 's32[2]{0}', space=sflag, size = 0x8, scoped, tag = 'scoped memory for tpu_custom_call.1']
    #allocation6 [shape = 'u8[8192]{0}', space=vmem, size = 0x2000, scoped, tag = 'input window, operand 1']
    #allocation7 [shape = 'u8[8192]{0}', space=vmem, size = 0x2000, scoped, tag = 'output window, operand 0']
    %7 = vsyncpa [#allocation5], 0
    %8 = vsyncpa [#allocation3], 0
    %s9 = scalar_lea.sflag [#allocation3], 1
    %10 = vsyncpa %s9, 0
    %11 = vsyncpa [#allocation4], 0
    %s12 = scalar_lea.sflag [#allocation4], 1
    %13 = vsyncpa %s12, 0
    loop: start=0, step=1, limit=4
    $region2: #{tpu_custom_call.1} parent=1 // loop_pre_header
      _
    $region3: #{tpu_custom_call.1} parent=1 // loop_header
      %s15 = sphi 0, %s19
      %p16 = scmp.ge.s32.totalorder %s15, 4
      %s23 = sphi 0, %s23
      %s25 = sphi 0, %s23
      %s26 = sphi 0, %s25
      %s40 = sphi 0, %s26
      %s46 = sphi 0, %s48
      %s49 = sphi 0, %s46
      %s50 = sphi 0, %s49
      %s66 = sphi 0, %s50
      %s72 = sphi 0, %s74
      %s75 = sphi 0, %s72
      %s76 = sphi 0, %s75
      %s92 = sphi 0, %s76
    $region4: #{tpu_custom_call.1} parent=1 // loop_header_branch
      %18 = sbr.rel (%p16) target = $region8
    $region5: #{tpu_custom_call.1} parent=1 // loop_body
      %s20 = ssub.s32 %s15, 1
      %s21 = ssub.s32 %s15, 2
      %s22 = sadd.s32 %s15, 1
      %s24 = sadd.s32 %s23, 1
      %p27 = scmp.eq.s32.totalorder %s15, 1
      %p28 = scmp.ne.s32.totalorder %s23, %s25
      %p29 = scmp.eq.s32.totalorder %s15, 0
      %p30 = por %p28, %p29
      %p31 = scmp.ne.s32.totalorder %s23, %s25
      %p32 = scmp.eq.s32.totalorder %s20, 1
      %p33 = por %p31, %p32
      %p34 = scmp.ne.s32.totalorder %s25, %s26
      %p35 = scmp.eq.s32.totalorder %s20, 0
      %p36 = por %p34, %p35
      %p37 = scmp.ne.s32.totalorder %s25, %s26
      %p38 = scmp.eq.s32.totalorder %s21, 1
      %p39 = por %p37, %p38
      %p41 = scmp.ne.s32.totalorder %s26, %s40
      %p42 = scmp.eq.s32.totalorder %s21, 0
      %p43 = por %p41, %p42
      %s44 = ssub.s32 %s15, %s22
      %p45 = scmp.eq.s32.totalorder %s44, 0
      %s47 = sadd.s32 %s46, 1
      %s48 = scalar_select %p45, %s46, %s47
      %p51 = pneg %p45
      %p52 = scmp.eq.s32.totalorder %s15, 1
      %p53 = por %p51, %p52
      %p54 = scmp.ne.s32.totalorder %s46, %s49
      %p55 = scmp.eq.s32.totalorder %s15, 0
      %p56 = por %p54, %p55
      %p57 = scmp.ne.s32.totalorder %s46, %s49
      %p58 = scmp.eq.s32.totalorder %s20, 1
      %p59 = por %p57, %p58
      %p60 = scmp.ne.s32.totalorder %s49, %s50
      %p61 = scmp.eq.s32.totalorder %s20, 0
      %p62 = por %p60, %p61
      %p63 = scmp.ne.s32.totalorder %s49, %s50
      %p64 = scmp.eq.s32.totalorder %s21, 1
      %p65 = por %p63, %p64
      %p67 = scmp.ne.s32.totalorder %s50, %s66
      %p68 = scmp.eq.s32.totalorder %s21, 0
      %p69 = por %p67, %p68
      %s70 = ssub.s32 %s15, %s22
      %p71 = scmp.eq.s32.totalorder %s70, 0
      %s73 = sadd.s32 %s72, 1
      %s74 = scalar_select %p71, %s72, %s73
      %p77 = pneg %p71
      %p78 = scmp.eq.s32.totalorder %s15, 1
      %p79 = por %p77, %p78
      %p80 = scmp.ne.s32.totalorder %s72, %s75
      %p81 = scmp.eq.s32.totalorder %s15, 0
      %p82 = por %p80, %p81
      %p83 = scmp.ne.s32.totalorder %s72, %s75
      %p84 = scmp.eq.s32.totalorder %s20, 1
      %p85 = por %p83, %p84
      %p86 = scmp.ne.s32.totalorder %s75, %s76
      %p87 = scmp.eq.s32.totalorder %s20, 0
      %p88 = por %p86, %p87
      %p89 = scmp.ne.s32.totalorder %s75, %s76
      %p90 = scmp.eq.s32.totalorder %s21, 1
      %p91 = por %p89, %p90
      %p93 = scmp.ne.s32.totalorder %s76, %s92
      %p94 = scmp.eq.s32.totalorder %s21, 0
      %p95 = por %p93, %p94
      %p96 = scmp.le.s32.totalorder 1, %s15
      %p97 = scmp.lt.s32.totalorder %s15, 3
      %p98 = pnand %p96, %p97
      %p99 = pneg %p98
      // Predicated region
      $region9: #{tpu_custom_call.1} parent=5 // pred_check
        _
      $region10: #{tpu_custom_call.1} parent=5 // pred_check_branch
        %101 = sbr.rel (%p98) target = $region12
      $region11: #{tpu_custom_call.1} parent=5 // pred_region
        %s102 = ssub.s32 %s15, 1
        // Predicated region
        $region13: #{tpu_custom_call.1} parent=11 // pred_check
          %p103 = pneg %p36
        $region14: #{tpu_custom_call.1} parent=11 // pred_check_branch
          %105 = sbr.rel (%p103) target = $region16
        $region15: #{tpu_custom_call.1} parent=11 // pred_region
          %s107 = ssub.s32 16, 16
          %108 = vsyncadd [#allocation5], %s107
          %111 = dma.hbm_to_smem %s0, 16, [#allocation2], [#allocation5]
        $region16: #{tpu_custom_call.1} parent=11 // pred_fallthru
          _
      $region12: #{tpu_custom_call.1} parent=5 // pred_fallthru
        _
      %p112 = scmp.lt.s32.totalorder %s15, 2
      // Predicated region
      $region17: #{tpu_custom_call.1} parent=5 // pred_check
        %p113 = pneg %p112
      $region18: #{tpu_custom_call.1} parent=5 // pred_check_branch
        %115 = sbr.rel (%p113) target = $region20
      $region19: #{tpu_custom_call.1} parent=5 // pred_region
        // Predicated region
        $region21: #{tpu_custom_call.1} parent=19 // pred_check
          %p116 = pneg %p56
        $region22: #{tpu_custom_call.1} parent=19 // pred_check_branch
          %118 = sbr.rel (%p116) target = $region24
        $region23: #{tpu_custom_call.1} parent=19 // pred_region
          %s119 = sand.u32 %s46, 1
          %s120 = scalar_lea.sflag [#allocation3], %s119
          %s121 = sand.u32 %s46, 1
          %s122 = smul.addr %s121, 8
          %s123 = scalar_lea.vmem [#allocation6], %s122
          %s125 = ssub.s32 128, 128
          %126 = vsyncadd %s120, %s125
          %s127 = smul.addr %s15, 128
          %s128 = scalar_lea.hbm %s1, %s127
          %s130 = sshll.u32 %s123, 4
          %s131 = int_to_ptr.vmem [resolvable:$true] %s130
          %133 = dma.hbm_to_vmem [thread:$0]  %s128, 128, %s131, %s120
        $region24: #{tpu_custom_call.1} parent=19 // pred_fallthru
          _
      $region20: #{tpu_custom_call.1} parent=5 // pred_fallthru
        _
      %p134 = scmp.le.s32.totalorder 1, %s15
      %p135 = scmp.lt.s32.totalorder %s15, 3
      %p136 = pnand %p134, %p135
      %p137 = pneg %p136
      // Predicated region
      $region25: #{tpu_custom_call.1} parent=5 // pred_check
        _
      $region26: #{tpu_custom_call.1} parent=5 // pred_check_branch
        %139 = sbr.rel (%p136) target = $region28
      $region27: #{tpu_custom_call.1} parent=5 // pred_region
        %s140 = ssub.s32 %s15, 1
        // Predicated region
        $region29: #{tpu_custom_call.1} parent=27 // pred_check
          %p141 = pneg %p36
        $region30: #{tpu_custom_call.1} parent=27 // pred_check_branch
          %143 = sbr.rel (%p141) target = $region32
        $region31: #{tpu_custom_call.1} parent=27 // pred_region
          %144 = dma.done [#allocation5], 16
        $region32: #{tpu_custom_call.1} parent=27 // pred_fallthru
          _
        %s145 = sand.u32 %s49, 1
        %s146 = scalar_lea.sflag [#allocation3], %s145
        %s147 = sand.u32 %s49, 1
        %s148 = smul.addr %s147, 8
        %s149 = scalar_lea.vmem [#allocation6], %s148
        // Predicated region
        $region33: #{tpu_custom_call.1} parent=27 // pred_check
          %p150 = pneg %p62
        $region34: #{tpu_custom_call.1} parent=27 // pred_check_branch
          %152 = sbr.rel (%p150) target = $region36
        $region35: #{tpu_custom_call.1} parent=27 // pred_region
          %153 = dma.done %s146, 128
        $region36: #{tpu_custom_call.1} parent=27 // pred_fallthru
          _
        %154 = sfence
        %p155 = pneg %p36
        %p156 = pneg %p33
        %s157 = sand.u32 %s49, 1
        %s158 = scalar_lea.sflag [#allocation3], %s157
        %s159 = sand.u32 %s49, 1
        %s160 = smul.addr %s159, 8
        %s161 = scalar_lea.vmem [#allocation6], %s160
        %p162 = pneg %p62
        %p163 = pneg %p59
        %p164 = pneg %p88
        %p165 = pneg %p85
        %s166 = sand.u32 %s75, 1
        %s167 = scalar_lea.sflag [#allocation4], %s166
        %s168 = sand.u32 %s75, 1
        %s169 = smul.addr %s168, 8
        %s170 = scalar_lea.vmem [#allocation7], %s169
        %s171 = sld [smem:[#allocation2]]
        %s172 = sld [smem:[#allocation2 + $0x1]]
        %s173 = sld [smem:[#allocation2 + $0x2]]
        %v174 = vld [vmem:[%s149] sm:$0xff]
        %v175 = vstv %s173
        %v176 = vmul.f32 %v175, %v174
        %v177 = vstv %s172
        %v178 = vadd.f32 %v177, %v176
        %v179 = vmul.f32 %v174, %v178
        %v180 = vstv %s171
        %v181 = vadd.f32 %v180, %v179
        %182 = vst [vmem:[%s170] sm:$0xff] %v181
        %s183 = sand.u32 %s75, 1
        %s184 = scalar_lea.sflag [#allocation4], %s183
        %s185 = sand.u32 %s75, 1
        %s186 = smul.addr %s185, 8
        %s187 = scalar_lea.vmem [#allocation7], %s186
        // Predicated region
        $region37: #{tpu_custom_call.1} parent=27 // pred_check
          %p188 = pneg %p85
        $region38: #{tpu_custom_call.1} parent=27 // pred_check_branch
          %190 = sbr.rel (%p188) target = $region40
        $region39: #{tpu_custom_call.1} parent=27 // pred_region
          %s192 = ssub.s32 128, 128
          %193 = vsyncadd %s184, %s192
          %s194 = smul.addr %s20, 128
          %s195 = scalar_lea.hbm %s2, %s194
          %s197 = sshll.u32 %s187, 4
          %s198 = int_to_ptr.vmem [resolvable:$true] %s197
          %200 = dma.vmem_to_hbm [thread:$0]  %s198, 128, %s195, %s184
        $region40: #{tpu_custom_call.1} parent=27 // pred_fallthru
          _
      $region28: #{tpu_custom_call.1} parent=5 // pred_fallthru
        _
      %p201 = scmp.le.s32.totalorder 2, %s15
      // Predicated region
      $region41: #{tpu_custom_call.1} parent=5 // pred_check
        %p202 = pneg %p201
      $region42: #{tpu_custom_call.1} parent=5 // pred_check_branch
        %204 = sbr.rel (%p202) target = $region44
      $region43: #{tpu_custom_call.1} parent=5 // pred_region
        %s205 = ssub.s32 %s15, 2
        // Predicated region
        $region45: #{tpu_custom_call.1} parent=43 // pred_check
          %p206 = pneg %p91
        $region46: #{tpu_custom_call.1} parent=43 // pred_check_branch
          %208 = sbr.rel (%p206) target = $region48
        $region47: #{tpu_custom_call.1} parent=43 // pred_region
          %s209 = sand.u32 %s76, 1
          %s210 = scalar_lea.sflag [#allocation4], %s209
          %s211 = sand.u32 %s76, 1
          %s212 = smul.addr %s211, 8
          %s213 = scalar_lea.vmem [#allocation7], %s212
          %214 = dma.done %s210, 128
        $region48: #{tpu_custom_call.1} parent=43 // pred_fallthru
          _
      $region44: #{tpu_custom_call.1} parent=5 // pred_fallthru
        _
    $region6: #{tpu_custom_call.1} parent=1 // loop_footer
      %s19 = sadd.s32 1, %s15
    $region7: #{tpu_custom_call.1} parent=1 // loop_footer_branch
      %14 = sbr.rel target = $region3
    $region8: #{tpu_custom_call.1} parent=1 // loop_exit
      _
    %215 = vsyncpa [#allocation3], 1
    %s216 = scalar_lea.sflag [#allocation3], 1
    %217 = vsyncpa %s216, 1
    %218 = vsyncpa [#allocation4], 1
    %s219 = scalar_lea.sflag [#allocation4], 1
    %220 = vsyncpa %s219, 1
    %221 = vsyncpa [#allocation5], 1
    %s222 = scalar_lea.sflag [#allocation5], 1
    %223 = vsyncpa %s222, 1

</llo_original>
